<compile_context>
chip_gen: v7x
topology: tpu7x:2x2x1
jax: 0.10.0
libtpu: 0.0.40
codegen_flags: <defaults>
</compile_context>

<pallas_src>
import functools

import jax
import jax.numpy as jnp
from jax.experimental import pallas as pl
from jax.experimental.pallas import tpu as pltpu


# ----------------------------------------------------------------------------
# Hardware / budget helpers
# ----------------------------------------------------------------------------
def _round_up(x, m):
    return ((x + m - 1) // m) * m


def _vmem_capacity_bytes():
    """Per-core VMEM capacity; conservative fallback (v7x = 64 MiB/TC)."""
    try:
        return int(pltpu.get_tpu_info().vmem_capacity_bytes)
    except Exception:
        return 64 * 1024 * 1024


def _vmem_limit_bytes():
    # Raise the scoped VMEM limit above the 16/32 MiB default, but leave
    # headroom for compiler-internal scratch (important on v7x's 64 MiB).
    return int(_vmem_capacity_bytes() * 3 // 4)


def _vmem_budget_bytes():
    # Budget used when sizing tiles (double-buffered working set must fit).
    return int(_vmem_capacity_bytes() // 2)


def _tile_bytes(tm, tn, tk, itemsize):
    # Double-buffered A, B and output tiles + a (worst-case) f32 accumulator.
    return 2 * (tm * tk + tk * tn + tm * tn) * itemsize + tm * tn * 4


def _choose_tiles(M, N, K, itemsize, budget):
    """Pick MXU-aligned tiles, largest first, that fit in the VMEM budget."""
    m_aligned = _round_up(M, 8)      # sublane-aligned
    n_aligned = _round_up(N, 128)    # lane-dense output (unmasked vst)
    k_aligned = _round_up(K, 128)
    for tm_c in (512, 256, 128):
        for tn_c in (512, 256, 128):
            for tk_c in (2048, 1024, 512, 256, 128):
                tm = min(tm_c, m_aligned)
                tn = min(tn_c, n_aligned)
                tk = min(tk_c, k_aligned)
                if _tile_bytes(tm, tn, tk, itemsize) <= budget:
                    return tm, tn, tk
    # Fallback: smallest aligned tiles.
    return min(128, m_aligned), min(128, n_aligned), min(128, k_aligned)


# ----------------------------------------------------------------------------
# Kernels
# ----------------------------------------------------------------------------
def _matmul_kernel_f32_out(a_ref, b_ref, o_ref):
    # Output block index is constant across k -> o_ref stays VMEM-resident,
    # so accumulate straight into it (saves the scratch + final copy).
    @pl.when(pl.program_id(2) == 0)
    def _():
        o_ref[...] = jnp.zeros_like(o_ref)

    o_ref[...] += jnp.dot(
        a_ref[...], b_ref[...], preferred_element_type=jnp.float32
    )


def _matmul_kernel_acc(a_ref, b_ref, o_ref, acc_ref):
    # Non-f32 output: accumulate in an f32 VMEM scratch, cast on the last step.
    @pl.when(pl.program_id(2) == 0)
    def _():
        acc_ref[...] = jnp.zeros_like(acc_ref)

    acc_ref[...] += jnp.dot(
        a_ref[...], b_ref[...], preferred_element_type=jnp.float32
    )

    @pl.when(pl.program_id(2) == pl.num_programs(2) - 1)
    def _():
        o_ref[...] = acc_ref[...].astype(o_ref.dtype)


# ----------------------------------------------------------------------------
# pallas_call wrapper
# ----------------------------------------------------------------------------
@functools.partial(jax.jit, static_argnames=("tm", "tn", "tk"))
def _pallas_matmul_padded(lhs, rhs, *, tm, tn, tk):
    """lhs: (M, K), rhs: (K, N), all dims already multiples of the tiles."""
    M, K = lhs.shape
    _, N = rhs.shape
    grid = (M // tm, N // tn, K // tk)

    out_dtype = jnp.result_type(lhs.dtype, rhs.dtype)
    f32_out = out_dtype == jnp.float32
    kernel = _matmul_kernel_f32_out if f32_out else _matmul_kernel_acc
    scratch = [] if f32_out else [pltpu.VMEM((tm, tn), jnp.float32)]

    return pl.pallas_call(
        kernel,
        out_shape=jax.ShapeDtypeStruct((M, N), out_dtype),
        grid_spec=pltpu.PrefetchScalarGridSpec(
            num_scalar_prefetch=0,
            grid=grid,
            in_specs=[
                pl.BlockSpec((tm, tk), lambda i, j, k: (i, k)),
                pl.BlockSpec((tk, tn), lambda i, j, k: (k, j)),
            ],
            out_specs=pl.BlockSpec((tm, tn), lambda i, j, k: (i, j)),
            scratch_shapes=scratch,
        ),
        compiler_params=pltpu.CompilerParams(
            dimension_semantics=("parallel", "parallel", "arbitrary"),
            vmem_limit_bytes=_vmem_limit_bytes(),
        ),
    )(lhs, rhs)


def pallas_matmul(lhs, rhs, *, tm=None, tn=None, tk=None):
    """out = lhs @ rhs via a tiled Pallas TPU kernel (arbitrary 2-D shapes)."""
    M, K = lhs.shape
    K2, N = rhs.shape
    assert K == K2, f"inner dims mismatch: {K} vs {K2}"

    itemsize = max(jnp.dtype(lhs.dtype).itemsize, jnp.dtype(rhs.dtype).itemsize)
    if tm is None or tn is None or tk is None:
        atm, atn, atk = _choose_tiles(M, N, K, itemsize, _vmem_budget_bytes())
        tm = tm or atm
        tn = tn or atn
        tk = tk or atk

    # Zero-pad up to tile multiples (K-padding contributes zeros -> exact),
    # so the fast 128-aligned, lane-dense tile path is used for any shape.
    Mp, Np, Kp = _round_up(M, tm), _round_up(N, tn), _round_up(K, tk)
    lhs_p = lhs if (Mp == M and Kp == K) else jnp.pad(lhs, ((0, Mp - M), (0, Kp - K)))
    rhs_p = rhs if (Kp == K and Np == N) else jnp.pad(rhs, ((0, Kp - K), (0, Np - N)))

    out = _pallas_matmul_padded(lhs_p, rhs_p, tm=tm, tn=tn, tk=tk)
    if Mp != M or Np != N:
        out = out[:M, :N]
    return out


# ----------------------------------------------------------------------------
# Module port
# ----------------------------------------------------------------------------
class TorchTensorMatmulPallas:
    """JAX/Pallas port of TorchTensorMatmul.

    weight `a` has shape `weight_shape`; forward applies
      order='pre'  : a @ inputs
      order='post' : inputs @ a
    """

    def __init__(self, weight_shape, dtype=jnp.float32, order="post", key=None):
        self.order = order
        self.dtype = dtype
        if key is None:
            key = jax.random.PRNGKey(42)
        # torch.empty is uninitialized; use a deterministic random init instead.
        self.a = jax.random.normal(key, tuple(weight_shape), dtype=dtype)

    def __call__(self, inputs):
        if self.order == "pre":
            return pallas_matmul(self.a, inputs)
        elif self.order == "post":
            return pallas_matmul(inputs, self.a)
        else:
            raise NotImplementedError(f"undefined order {self.order}")


if __name__ == "__main__":
    key = jax.random.PRNGKey(0)
    k_x, k_w = jax.random.split(key)

    # small shapes: seq=8, hidden=32
    M, K, N = 8, 32, 32
    x = jax.random.normal(k_x, (M, K), dtype=jnp.float32)

    # order='post': out = x @ a,  a: [K, N]
    mod_post = TorchTensorMatmulPallas((K, N), dtype=jnp.float32, order="post", key=k_w)
    out_post = mod_post(x)
    jax.block_until_ready(out_post)
    ref_post = x @ mod_post.a
    assert out_post.shape == (M, N)
    assert jnp.allclose(out_post, ref_post, atol=1e-5, rtol=1e-5)

    # order='pre': out = a @ x,  a: [M, M] so a @ x is well-formed
    mod_pre = TorchTensorMatmulPallas((M, M), dtype=jnp.float32, order="pre", key=k_w)
    out_pre = mod_pre(x)
    jax.block_until_ready(out_pre)
    ref_pre = mod_pre.a @ x
    assert out_pre.shape == (M, K)
    assert jnp.allclose(out_pre, ref_pre, atol=1e-5, rtol=1e-5)

    # also exercise a non-tiny, non-tile-multiple shape through the padded path
    Mb, Kb, Nb = 200, 384, 320
    xb = jax.random.normal(k_x, (Mb, Kb), dtype=jnp.float32)
    wb = jax.random.normal(k_w, (Kb, Nb), dtype=jnp.float32)
    ob = pallas_matmul(xb, wb)
    jax.block_until_ready(ob)
    assert jnp.allclose(ob, xb @ wb, atol=1e-4, rtol=1e-4)

    print("KERNEL_OK")
</pallas_src>

<mosaic_0001>
module attributes {stable_mosaic.version = 11 : i64} {
  func.func @_matmul_kernel_f32_out(%arg0: i32, %arg1: i32, %arg2: i32, %arg3: memref<8x128xf32, #tpu.memory_space<vmem>>, %arg4: memref<128x128xf32, #tpu.memory_space<vmem>>, %arg5: memref<8x128xf32, #tpu.memory_space<vmem>>) attributes {dimension_semantics = [#tpu.dimension_semantics<parallel>, #tpu.dimension_semantics<parallel>, #tpu.dimension_semantics<arbitrary>], iteration_bounds = array<i64: 1, 1, 1>, scalar_prefetch = 0 : i64, scratch_operands = 0 : i64, tpu.core_type = #tpu.core_type<tc>, window_params = [{transform_indices = @transform_0, window_bounds = array<i64: 8, 128>}, {transform_indices = @transform_1, window_bounds = array<i64: 128, 128>}, {transform_indices = @transform_2, window_bounds = array<i64: 8, 128>}]} {
    %c0_i32 = arith.constant 0 : i32
    %0 = arith.cmpi eq, %arg2, %c0_i32 : i32
    %1 = arith.extui %0 : i1 to i32
    %c0_i32_0 = arith.constant 0 : i32
    %2 = arith.cmpi ne, %1, %c0_i32_0 : i32
    scf.if %2 {
      %cst_8 = arith.constant 0.000000e+00 : f32
      %9 = vector.broadcast %cst_8 : f32 to vector<8x128xf32>
      %c0_9 = arith.constant 0 : index
      %c0_10 = arith.constant 0 : index
      %10 = vector.load %arg5[%c0_9, %c0_10] : memref<8x128xf32, #tpu.memory_space<vmem>>, vector<8x128xf32>
      tpu.vector_store %arg5[%c0_9, %c0_10], %9 {strides = array<i32>} : memref<8x128xf32, #tpu.memory_space<vmem>>, vector<8x128xf32>,
    } else {
    }
    %c0 = arith.constant 0 : index
    %c0_1 = arith.constant 0 : index
    %3 = vector.load %arg5[%c0, %c0_1] : memref<8x128xf32, #tpu.memory_space<vmem>>, vector<8x128xf32>
    %c0_2 = arith.constant 0 : index
    %c0_3 = arith.constant 0 : index
    %4 = vector.load %arg3[%c0_2, %c0_3] : memref<8x128xf32, #tpu.memory_space<vmem>>, vector<8x128xf32>
    %c0_4 = arith.constant 0 : index
    %c0_5 = arith.constant 0 : index
    %5 = vector.load %arg4[%c0_4, %c0_5] : memref<128x128xf32, #tpu.memory_space<vmem>>, vector<128x128xf32>
    %cst = arith.constant dense<0.000000e+00> : vector<8x128xf32>
    %6 = tpu.matmul %4, %5, %cst {dimension_numbers = #tpu.dot_dimension_numbers<[1], [0], [0], [1], [0, 0, 1, 1], [], []>} : vector<8x128xf32>, vector<128x128xf32>, vector<8x128xf32> -> vector<8x128xf32>
    %7 = arith.addf %3, %6 : vector<8x128xf32>
    %c0_6 = arith.constant 0 : index
    %c0_7 = arith.constant 0 : index
    %8 = vector.load %arg5[%c0_6, %c0_7] : memref<8x128xf32, #tpu.memory_space<vmem>>, vector<8x128xf32>
    tpu.vector_store %arg5[%c0_6, %c0_7], %7 {strides = array<i32>} : memref<8x128xf32, #tpu.memory_space<vmem>>, vector<8x128xf32>,
    return
  }
  func.func @transform_0(%arg0: i32, %arg1: i32, %arg2: i32) -> (i32, i32) {
    %c0_i32 = arith.constant 0 : i32
    return %arg0, %arg2 : i32, i32
  }
  func.func @transform_1(%arg0: i32, %arg1: i32, %arg2: i32) -> (i32, i32) {
    %c0_i32 = arith.constant 0 : i32
    return %arg2, %arg1 : i32, i32
  }
  func.func @transform_2(%arg0: i32, %arg1: i32, %arg2: i32) -> (i32, i32) {
    %c0_i32 = arith.constant 0 : i32
    return %arg0, %arg1 : i32, i32
  }
}

</mosaic_0001>

<llo_original>
// kernel: _pallas_matmul_padded.1
$region0: #{_pallas_matmul_padded.1}
  #allocation0 [shape = 'u32[]', space=smem, size = 0x4, offset = 0x4, fixed_abs, tag = 'smem constant byte address 0x4 - core index']
  #allocation1 [shape = 'u32[144,128]{1,0:T(1,128)}', space=vmem, size = 0x12000, scoped, tag = 'internal scratch']
  %s0 = inlined_call_operand.hbm [shape: f32[8,128], index: 0, kind: input, shape index: {}]
  %s1 = inlined_call_operand.hbm [shape: f32[128,128], index: 1, kind: input, shape index: {}]
  %s2 = inlined_call_operand.hbm [shape: f32[8,128], index: 2, kind: output, shape index: {}]
  %s3 = sld [smem:[#allocation0]]
  $region30: #{_pallas_matmul_padded.1} parent=0
    _
  %s5 = ssub.s32 1, %s3
  %s6 = scalar_select 0, %s5, %s3
  $region1: #{_pallas_matmul_padded.1} parent=0
    #allocation2 [shape = 'u8[4096]{0}', space=vmem, size = 0x1000, scoped, tag = 'input window, operand 0, single buffered']
    #allocation3 [shape = 's32[1]{0}', space=sflag, size = 0x4, scoped, tag = 'scoped memory for _pallas_matmul_padded.1']
    #allocation4 [shape = 's32[1]{0}', space=sflag, size = 0x4, scoped, tag = 'scoped memory for _pallas_matmul_padded.1']
    #allocation5 [shape = 'u8[65536]{0}', space=vmem, size = 0x10000, scoped, tag = 'input window, operand 1, single buffered']
    #allocation6 [shape = 's32[1]{0}', space=sflag, size = 0x4, scoped, tag = 'scoped memory for _pallas_matmul_padded.1']
    #allocation7 [shape = 'u8[4096]{0}', space=vmem, size = 0x1000, scoped, tag = 'output window, operand 0, single buffered']
    %7 = vsyncpa [#allocation3], 0
    %8 = vsyncpa [#allocation6], 0
    %9 = vsyncpa [#allocation4], 0
    // Predicated region
    $region2: #{_pallas_matmul_padded.1} parent=1 // pred_check
      _
    $region3: #{_pallas_matmul_padded.1} parent=1 // pred_check_branch
      %11 = sbr.rel (0) target = $region5
    $region4: #{_pallas_matmul_padded.1} parent=1 // pred_region
      %s13 = ssub.s32 128, 128
      %14 = vsyncadd [#allocation3], %s13
      %s16 = sshll.u32 [#allocation2], 4
      %s17 = int_to_ptr.vmem [resolvable:$true] %s16
      %19 = dma.hbm_to_vmem [thread:$0]  %s0, 128, %s17, [#allocation3]
    $region5: #{_pallas_matmul_padded.1} parent=1 // pred_fallthru
      _
    // Predicated region
    $region6: #{_pallas_matmul_padded.1} parent=1 // pred_check
      _
    $region7: #{_pallas_matmul_padded.1} parent=1 // pred_check_branch
      %21 = sbr.rel (0) target = $region9
    $region8: #{_pallas_matmul_padded.1} parent=1 // pred_region
      %s23 = ssub.s32 2048, 2048
      %24 = vsyncadd [#allocation6], %s23
      %s25 = sshll.u32 [#allocation5], 4
      %s26 = int_to_ptr.vmem [resolvable:$true] %s25
      %31 = dma.hbm_to_vmem [thread:$0]  %s1, 2048, %s26, [#allocation6], 128, 128, 8
    $region9: #{_pallas_matmul_padded.1} parent=1 // pred_fallthru
      _
    // Predicated region
    $region10: #{_pallas_matmul_padded.1} parent=1 // pred_check
      _
    $region11: #{_pallas_matmul_padded.1} parent=1 // pred_check_branch
      %33 = sbr.rel (0) target = $region13
    $region12: #{_pallas_matmul_padded.1} parent=1 // pred_region
      %34 = dma.done [#allocation3], 128
    $region13: #{_pallas_matmul_padded.1} parent=1 // pred_fallthru
      _
    // Predicated region
    $region14: #{_pallas_matmul_padded.1} parent=1 // pred_check
      _
    $region15: #{_pallas_matmul_padded.1} parent=1 // pred_check_branch
      %36 = sbr.rel (0) target = $region17
    $region16: #{_pallas_matmul_padded.1} parent=1 // pred_region
      %37 = dma.done [#allocation6], 2048
    $region17: #{_pallas_matmul_padded.1} parent=1 // pred_fallthru
      _
    %p38 = scmp.eq.s32.totalorder 0, 0
    // Predicated region
    $region18: #{_pallas_matmul_padded.1} parent=1 // pred_check
      %p39 = pneg %p38
    $region19: #{_pallas_matmul_padded.1} parent=1 // pred_check_branch
      %41 = sbr.rel (%p39) target = $region21
    $region20: #{_pallas_matmul_padded.1} parent=1 // pred_region
      %42 = vst [vmem:[#allocation7] sm:$0xff] 0.0
    $region21: #{_pallas_matmul_padded.1} parent=1 // pred_fallthru
      _
    %v43 = vld [vmem:[#allocation7] sm:$0xff]
    %v44 = vld [vmem:[#allocation2] sm:$0xff]
    %v45 = vld [vmem:[#allocation5] sm:$0xff]
    %v46 = vld [vmem:[#allocation5 + $0x8] sm:$0xff]
    %v47 = vld [vmem:[#allocation5 + $0x10] sm:$0xff]
    %v48 = vld [vmem:[#allocation5 + $0x18] sm:$0xff]
    %v49 = vld [vmem:[#allocation5 + $0x20] sm:$0xff]
    %v50 = vld [vmem:[#allocation5 + $0x28] sm:$0xff]
    %v51 = vld [vmem:[#allocation5 + $0x30] sm:$0xff]
    %v52 = vld [vmem:[#allocation5 + $0x38] sm:$0xff]
    %v53 = vld [vmem:[#allocation5 + $0x40] sm:$0xff]
    %v54 = vld [vmem:[#allocation5 + $0x48] sm:$0xff]
    %v55 = vld [vmem:[#allocation5 + $0x50] sm:$0xff]
    %v56 = vld [vmem:[#allocation5 + $0x58] sm:$0xff]
    %v57 = vld [vmem:[#allocation5 + $0x60] sm:$0xff]
    %v58 = vld [vmem:[#allocation5 + $0x68] sm:$0xff]
    %v59 = vld [vmem:[#allocation5 + $0x70] sm:$0xff]
    %v60 = vld [vmem:[#allocation5 + $0x78] sm:$0xff]
    %61 = vmatprep.subr.mxu0 0.0
    %62 = vmatpush1.msra.mxu0 %v45
    %63 = vmatprep.subr.mxu0 0.0
    %64 = vmatpush1.msra.mxu0 %v46
    %65 = vmatprep.subr.mxu0 0.0
    %66 = vmatpush1.msra.mxu0 %v47
    %67 = vmatprep.subr.mxu0 0.0
    %68 = vmatpush1.msra.mxu0 %v48
    %69 = vmatprep.subr.mxu0 0.0
    %70 = vmatpush1.msra.mxu0 %v49
    %71 = vmatprep.subr.mxu0 0.0
    %72 = vmatpush1.msra.mxu0 %v50
    %73 = vmatprep.subr.mxu0 0.0
    %74 = vmatpush1.msra.mxu0 %v51
    %75 = vmatprep.subr.mxu0 0.0
    %76 = vmatpush1.msra.mxu0 %v52
    %77 = vmatprep.subr.mxu0 0.0
    %78 = vmatpush1.msra.mxu0 %v53
    %79 = vmatprep.subr.mxu0 0.0
    %80 = vmatpush1.msra.mxu0 %v54
    %81 = vmatprep.subr.mxu0 0.0
    %82 = vmatpush1.msra.mxu0 %v55
    %83 = vmatprep.subr.mxu0 0.0
    %84 = vmatpush1.msra.mxu0 %v56
    %85 = vmatprep.subr.mxu0 0.0
    %86 = vmatpush1.msra.mxu0 %v57
    %87 = vmatprep.subr.mxu0 0.0
    %88 = vmatpush1.msra.mxu0 %v58
    %89 = vmatprep.subr.mxu0 0.0
    %90 = vmatpush1.msra.mxu0 %v59
    %91 = vmatprep.subr.mxu0 0.0
    %92 = vmatpush1.msra.mxu0 %v60
    %93 = vmatprep.subr.mxu0 0.0
    %94 = vmatpush1.msra.mxu0 0.0
    %95 = vmatprep.subr.mxu0 0.0
    %96 = vmatpush1.msra.mxu0 0.0
    %97 = vmatprep.subr.mxu0 0.0
    %98 = vmatpush1.msra.mxu0 0.0
    %99 = vmatprep.subr.mxu0 0.0
    %100 = vmatpush1.msra.mxu0 0.0
    %101 = vmatprep.subr.mxu0 0.0
    %102 = vmatpush1.msra.mxu0 0.0
    %103 = vmatprep.subr.mxu0 0.0
    %104 = vmatpush1.msra.mxu0 0.0
    %105 = vmatprep.subr.mxu0 0.0
    %106 = vmatpush1.msra.mxu0 0.0
    %107 = vmatprep.subr.mxu0 0.0
    %108 = vmatpush1.msra.mxu0 0.0
    %109 = vmatprep.subr.mxu0 0.0
    %110 = vmatpush1.msra.mxu0 0.0
    %111 = vmatprep.subr.mxu0 0.0
    %112 = vmatpush1.msra.mxu0 0.0
    %113 = vmatprep.subr.mxu0 0.0
    %114 = vmatpush1.msra.mxu0 0.0
    %115 = vmatprep.subr.mxu0 0.0
    %116 = vmatpush1.msra.mxu0 0.0
    %117 = vmatprep.subr.mxu0 0.0
    %118 = vmatpush1.msra.mxu0 0.0
    %119 = vmatprep.subr.mxu0 0.0
    %120 = vmatpush1.msra.mxu0 0.0
    %121 = vmatprep.subr.mxu0 0.0
    %122 = vmatpush1.msra.mxu0 0.0
    %123 = vmatprep.subr.mxu0 0.0
    %124 = vmatpush1.msra.mxu0 0.0
    %125 = vmatprep.mubr.f32.mxu0 0.0
    %126 = vmatmul.mubr.f32.gmra.mrb[0].mxu0 %v44
    %v127 = vpop.f32.mrb[0].mxu0
    %v128 = vadd.f32 0.0, %v127
    %v129 = vpop.f32.mrb[0].mxu0
    %130 = vdwg.mxu0
    %v131 = vadd.f32 %v43, %v128
    %132 = vst [vmem:[#allocation7] sm:$0xff] %v131
    // Predicated region
    $region22: #{_pallas_matmul_padded.1} parent=1 // pred_check
      _
    $region23: #{_pallas_matmul_padded.1} parent=1 // pred_check_branch
      %134 = sbr.rel (0) target = $region25
    $region24: #{_pallas_matmul_padded.1} parent=1 // pred_region
      %s136 = ssub.s32 128, 128
      %137 = vsyncadd [#allocation4], %s136
      %s139 = sshll.u32 [#allocation7], 4
      %s140 = int_to_ptr.vmem [resolvable:$true] %s139
      %142 = dma.vmem_to_hbm [thread:$0]  %s140, 128, %s2, [#allocation4]
    $region25: #{_pallas_matmul_padded.1} parent=1 // pred_fallthru
      _
    // Predicated region
    $region26: #{_pallas_matmul_padded.1} parent=1 // pred_check
      _
    $region27: #{_pallas_matmul_padded.1} parent=1 // pred_check_branch
      %144 = sbr.rel (0) target = $region29
    $region28: #{_pallas_matmul_padded.1} parent=1 // pred_region
      %145 = dma.done [#allocation4], 128
    $region29: #{_pallas_matmul_padded.1} parent=1 // pred_fallthru
      _
    %146 = vsyncpa [#allocation3], 1
    %147 = vsyncpa [#allocation6], 1
    %148 = vsyncpa [#allocation4], 1

</llo_original>
